<compile_context>
chip_gen: v5e
topology: v5e:2x2
jax: 0.10.0
libtpu: 0.0.40
codegen_flags: <defaults>
</compile_context>

<pallas_src>
import functools

import jax
import jax.numpy as jnp
from jax.experimental import pallas as pl
from jax.experimental.pallas import tpu as pltpu


def _highway_kernel(x_ref, w_ref, b_ref, o_ref, *, n_layers, c):
    # x_ref : (C, tL)             one batch element, a block of length positions
    # w_ref : (n_layers, 2C, C)   fused [gate; linear] weights, (C_out, C_in)
    # b_ref : (n_layers, 2C, 1)   fused [gate; linear] biases
    x = x_ref[...].astype(jnp.float32)                       # (C, tL)
    for i in range(n_layers):                                # small & static -> unrolled
        w = w_ref[i]                                         # (2C, C)
        b = b_ref[i]                                         # (2C, 1)
        y = jnp.dot(w, x, preferred_element_type=jnp.float32) + b   # (2C, tL)
        gate = jax.nn.sigmoid(y[:c, :])                      # (C, tL)
        nonlinear = y[c:, :]                                 # (C, tL)
        # dropout is identity in eval mode
        x = x + gate * (nonlinear - x)
    o_ref[...] = x.astype(o_ref.dtype)


def highway_forward(x_ncl, w_lin, b_lin, w_gate, b_gate, *, tl=2048):
    """Highway forward in native NCL layout.

    x_ncl : (N, C, L) float32
    w_*   : (n, C_out, C_in)  -- PyTorch Conv1d weight layout (kernel dim squeezed)
    b_*   : (n, C_out)
    """
    N, C, L = x_ncl.shape
    n_layers = w_lin.shape[0]

    # Fuse gate & linear params: one matmul per layer.  Rows [0:C] = gate,
    # rows [C:2C] = linear.
    w_fused = jnp.concatenate([w_gate, w_lin], axis=1)                 # (n, 2C, C)
    b_fused = jnp.concatenate([b_gate, b_lin], axis=1).reshape(n_layers, 2 * C, 1)

    # Length tiling: one full-extent block if it fits, otherwise 2048-wide
    # lane-aligned blocks (pad L up; padded columns are computed & sliced off).
    if L <= tl:
        tL = L
        L_pad = L
        x_p = x_ncl
    else:
        tL = tl
        L_pad = ((L + tL - 1) // tL) * tL
        x_p = jnp.pad(x_ncl, ((0, 0), (0, 0), (0, L_pad - L))) if L_pad != L else x_ncl

    grid = (N, L_pad // tL)

    out = pl.pallas_call(
        functools.partial(_highway_kernel, n_layers=n_layers, c=C),
        out_shape=jax.ShapeDtypeStruct((N, C, L_pad), x_ncl.dtype),
        grid_spec=pl.GridSpec(
            grid=grid,
            in_specs=[
                # x: one batch element (squeezed), C on sublanes, tL on lanes
                pl.BlockSpec((None, C, tL), lambda b, j: (b, 0, j)),
                # fused weights / biases: VMEM-resident across the whole grid
                pl.BlockSpec((n_layers, 2 * C, C), lambda b, j: (0, 0, 0)),
                pl.BlockSpec((n_layers, 2 * C, 1), lambda b, j: (0, 0, 0)),
            ],
            out_specs=pl.BlockSpec((None, C, tL), lambda b, j: (b, 0, j)),
        ),
        compiler_params=pltpu.CompilerParams(
            dimension_semantics=("parallel", "parallel")),
    )(x_p, w_fused, b_fused)

    if L_pad != L:
        out = out[:, :, :L]
    return out


def highway_reference(x_ncl, w_lin, b_lin, w_gate, b_gate):
    """Pure-JAX reference mirroring the PyTorch forward (eval mode)."""
    x = x_ncl
    for i in range(w_lin.shape[0]):
        gate_logits = jnp.einsum("oc,ncl->nol", w_gate[i], x) + b_gate[i][None, :, None]
        gate = jax.nn.sigmoid(gate_logits)
        nonlinear = jnp.einsum("oc,ncl->nol", w_lin[i], x) + b_lin[i][None, :, None]
        x = gate * nonlinear + (1.0 - gate) * x
    return x


if __name__ == "__main__":
    # Module config: Highway(layer_num=2, size=32); input (batch, size, length)
    layer_num = 2
    size = 32      # channels
    batch = 2
    length = 16

    key = jax.random.PRNGKey(0)
    kx, kwl, kbl, kwg, kbg = jax.random.split(key, 5)

    x = jax.random.normal(kx, (batch, size, length), dtype=jnp.float32)

    # Deterministic parameter init (xavier-uniform-like scale for 1x1 convs),
    # stored in PyTorch Conv1d layout (n, C_out, C_in).
    limit = (6.0 / (size + size)) ** 0.5
    w_lin = jax.random.uniform(kwl, (layer_num, size, size),
                               minval=-limit, maxval=limit, dtype=jnp.float32)
    w_gate = jax.random.uniform(kwg, (layer_num, size, size),
                                minval=-limit, maxval=limit, dtype=jnp.float32)
    b_lin = 0.01 * jax.random.normal(kbl, (layer_num, size), dtype=jnp.float32)
    b_gate = 0.01 * jax.random.normal(kbg, (layer_num, size), dtype=jnp.float32)

    out = highway_forward(x, w_lin, b_lin, w_gate, b_gate)
    out = jax.block_until_ready(out)

    ref = highway_reference(x, w_lin, b_lin, w_gate, b_gate)
    assert out.shape == x.shape
    assert jnp.allclose(out, ref, atol=1e-5, rtol=1e-5), "mismatch vs reference"

    print("KERNEL_OK")
</pallas_src>

<mosaic_0001>
module attributes {stable_mosaic.version = 11 : i64} {
  func.func @_highway_kernel(%arg0: i32, %arg1: i32, %arg2: memref<1x32x16xf32, #tpu.memory_space<vmem>>, %arg3: memref<2x64x32xf32, #tpu.memory_space<vmem>>, %arg4: memref<2x64x1xf32, #tpu.memory_space<vmem>>, %arg5: memref<1x32x16xf32, #tpu.memory_space<vmem>>) attributes {dimension_semantics = [#tpu.dimension_semantics<parallel>, #tpu.dimension_semantics<parallel>], iteration_bounds = array<i64: 2, 1>, scalar_prefetch = 0 : i64, scratch_operands = 0 : i64, tpu.core_type = #tpu.core_type<tc>, window_params = [{transform_indices = @transform_0, window_bounds = array<i64: 1, 32, 16>}, {pipeline_mode = #tpu.pipeline_mode<synchronous>, transform_indices = @transform_1, window_bounds = array<i64: 2, 64, 32>}, {pipeline_mode = #tpu.pipeline_mode<synchronous>, transform_indices = @transform_2, window_bounds = array<i64: 2, 64, 1>}, {transform_indices = @transform_3, window_bounds = array<i64: 1, 32, 16>}]} {
    %c0 = arith.constant 0 : index
    %c0_0 = arith.constant 0 : index
    %c0_1 = arith.constant 0 : index
    %0 = vector.load %arg2[%c0, %c0_0, %c0_1] : memref<1x32x16xf32, #tpu.memory_space<vmem>>, vector<1x32x16xf32>
    %1 = vector.shape_cast %0 : vector<1x32x16xf32> to vector<32x16xf32>
    %c0_2 = arith.constant 0 : index
    %c0_3 = arith.constant 0 : index
    %c0_4 = arith.constant 0 : index
    %2 = vector.load %arg3[%c0_2, %c0_3, %c0_4] : memref<2x64x32xf32, #tpu.memory_space<vmem>>, vector<1x64x32xf32>
    %3 = vector.shape_cast %2 : vector<1x64x32xf32> to vector<64x32xf32>
    %c0_5 = arith.constant 0 : index
    %c0_6 = arith.constant 0 : index
    %c0_7 = arith.constant 0 : index
    %4 = vector.load %arg4[%c0_5, %c0_6, %c0_7] : memref<2x64x1xf32, #tpu.memory_space<vmem>>, vector<1x64x1xf32>
    %5 = vector.shape_cast %4 : vector<1x64x1xf32> to vector<64x1xf32>
    %cst = arith.constant dense<0.000000e+00> : vector<64x16xf32>
    %6 = tpu.matmul %3, %1, %cst {dimension_numbers = #tpu.dot_dimension_numbers<[1], [0], [0], [1], [0, 0, 1, 1], [], []>} : vector<64x32xf32>, vector<32x16xf32>, vector<64x16xf32> -> vector<64x16xf32>
    %7 = vector.broadcast %5 : vector<64x1xf32> to vector<64x16xf32>
    %8 = arith.addf %6, %7 : vector<64x16xf32>
    %9 = vector.extract_strided_slice %8 {offsets = [0, 0], sizes = [32, 16], strides = [1, 1]} : vector<64x16xf32> to vector<32x16xf32>
    %10 = arith.negf %9 : vector<32x16xf32>
    %11 = math.exp %10 : vector<32x16xf32>
    %cst_8 = arith.constant 1.000000e+00 : f32
    %12 = vector.broadcast %cst_8 : f32 to vector<32x16xf32>
    %13 = arith.addf %12, %11 : vector<32x16xf32>
    %14 = arith.divf %12, %13 : vector<32x16xf32>
    %15 = vector.extract_strided_slice %8 {offsets = [32, 0], sizes = [32, 16], strides = [1, 1]} : vector<64x16xf32> to vector<32x16xf32>
    %16 = arith.subf %15, %1 : vector<32x16xf32>
    %17 = arith.mulf %14, %16 : vector<32x16xf32>
    %18 = arith.addf %1, %17 : vector<32x16xf32>
    %c1 = arith.constant 1 : index
    %c0_9 = arith.constant 0 : index
    %c0_10 = arith.constant 0 : index
    %19 = vector.load %arg3[%c1, %c0_9, %c0_10] : memref<2x64x32xf32, #tpu.memory_space<vmem>>, vector<1x64x32xf32>
    %20 = vector.shape_cast %19 : vector<1x64x32xf32> to vector<64x32xf32>
    %c1_11 = arith.constant 1 : index
    %c0_12 = arith.constant 0 : index
    %c0_13 = arith.constant 0 : index
    %21 = vector.load %arg4[%c1_11, %c0_12, %c0_13] : memref<2x64x1xf32, #tpu.memory_space<vmem>>, vector<1x64x1xf32>
    %22 = vector.shape_cast %21 : vector<1x64x1xf32> to vector<64x1xf32>
    %cst_14 = arith.constant dense<0.000000e+00> : vector<64x16xf32>
    %23 = tpu.matmul %20, %18, %cst_14 {dimension_numbers = #tpu.dot_dimension_numbers<[1], [0], [0], [1], [0, 0, 1, 1], [], []>} : vector<64x32xf32>, vector<32x16xf32>, vector<64x16xf32> -> vector<64x16xf32>
    %24 = vector.broadcast %22 : vector<64x1xf32> to vector<64x16xf32>
    %25 = arith.addf %23, %24 : vector<64x16xf32>
    %26 = vector.extract_strided_slice %25 {offsets = [0, 0], sizes = [32, 16], strides = [1, 1]} : vector<64x16xf32> to vector<32x16xf32>
    %27 = arith.negf %26 : vector<32x16xf32>
    %28 = math.exp %27 : vector<32x16xf32>
    %cst_15 = arith.constant 1.000000e+00 : f32
    %29 = vector.broadcast %cst_15 : f32 to vector<32x16xf32>
    %30 = arith.addf %29, %28 : vector<32x16xf32>
    %31 = arith.divf %29, %30 : vector<32x16xf32>
    %32 = vector.extract_strided_slice %25 {offsets = [32, 0], sizes = [32, 16], strides = [1, 1]} : vector<64x16xf32> to vector<32x16xf32>
    %33 = arith.subf %32, %18 : vector<32x16xf32>
    %34 = arith.mulf %31, %33 : vector<32x16xf32>
    %35 = arith.addf %18, %34 : vector<32x16xf32>
    %c0_16 = arith.constant 0 : index
    %c0_17 = arith.constant 0 : index
    %c0_18 = arith.constant 0 : index
    %36 = vector.load %arg5[%c0_16, %c0_17, %c0_18] : memref<1x32x16xf32, #tpu.memory_space<vmem>>, vector<1x32x16xf32>
    %37 = vector.shape_cast %36 : vector<1x32x16xf32> to vector<32x16xf32>
    %38 = vector.shape_cast %35 : vector<32x16xf32> to vector<1x32x16xf32>
    tpu.vector_store %arg5[%c0_16, %c0_17, %c0_18], %38 {strides = array<i32>} : memref<1x32x16xf32, #tpu.memory_space<vmem>>, vector<1x32x16xf32>,
    return
  }
  func.func @transform_0(%arg0: i32, %arg1: i32) -> (i32, i32, i32) {
    %c0_i32 = arith.constant 0 : i32
    %c0_i32_0 = arith.constant 0 : i32
    return %arg0, %c0_i32, %arg1 : i32, i32, i32
  }
  func.func @transform_1(%arg0: i32, %arg1: i32) -> (i32, i32, i32) {
    %c0_i32 = arith.constant 0 : i32
    %c0_i32_0 = arith.constant 0 : i32
    %c0_i32_1 = arith.constant 0 : i32
    %c0_i32_2 = arith.constant 0 : i32
    return %c0_i32, %c0_i32_0, %c0_i32_1 : i32, i32, i32
  }
  func.func @transform_2(%arg0: i32, %arg1: i32) -> (i32, i32, i32) {
    %c0_i32 = arith.constant 0 : i32
    %c0_i32_0 = arith.constant 0 : i32
    %c0_i32_1 = arith.constant 0 : i32
    %c0_i32_2 = arith.constant 0 : i32
    return %c0_i32, %c0_i32_0, %c0_i32_1 : i32, i32, i32
  }
  func.func @transform_3(%arg0: i32, %arg1: i32) -> (i32, i32, i32) {
    %c0_i32 = arith.constant 0 : i32
    %c0_i32_0 = arith.constant 0 : i32
    return %arg0, %c0_i32, %arg1 : i32, i32, i32
  }
}

</mosaic_0001>

<llo_original>
// kernel: tpu_custom_call.1
$region0: #{tpu_custom_call.1}
  #allocation0 [shape = 'u32[]', space=smem, size = 0x4, offset = 0x4, fixed_abs, tag = 'smem constant byte address 0x4 - core index']
  #allocation1 [shape = 'u32[72,128]{1,0:T(1,128)}', space=vmem, size = 0x9000, scoped, tag = 'internal scratch']
  %s0 = inlined_call_operand.vmem [shape: f32[2,32,16], index: 0, kind: input, shape index: {}]
  %s1 = inlined_call_operand.vmem [shape: f32[2,64,32], index: 1, kind: input, shape index: {}]
  %s2 = inlined_call_operand.vmem [shape: f32[2,64,1], index: 2, kind: input, shape index: {}]
  %s3 = inlined_call_operand.vmem [shape: f32[2,32,16], index: 3, kind: output, shape index: {}]
  %s4 = sld [smem:[#allocation0]]
  $region45: #{tpu_custom_call.1} parent=0
    _
  %s6 = ssub.s32 1, %s4
  %s7 = scalar_select 0, %s6, %s4
  loop: start=0, step=1, limit=4
  $region2: #{tpu_custom_call.1} parent=0 // loop_pre_header
    _
  $region3: #{tpu_custom_call.1} parent=0 // loop_header
    %s9 = sphi 0, %s13
    %p10 = scmp.ge.s32.totalorder %s9, 4
    %s16 = sphi 0, %s28
    %s17 = sphi 0, %s24
    %s18 = sphi 0, %s16
    %s19 = sphi 0, %s17
    %s20 = sphi 0, %s18
    %s21 = sphi 0, %s19
    %s33 = sphi 0, %s35
    %s36 = sphi 0, %s33
    %s37 = sphi 0, %s36
    %s53 = sphi 0, %s37
    %s57 = sphi 0, %s57
    %s59 = sphi 0, %s57
    %s60 = sphi 0, %s59
    %s74 = sphi 0, %s60
    %s78 = sphi 0, %s78
    %s80 = sphi 0, %s78
    %s81 = sphi 0, %s80
    %s95 = sphi 0, %s81
    %s103 = sphi 0, %s105
    %s106 = sphi 0, %s103
    %s107 = sphi 0, %s106
    %s123 = sphi 0, %s107
  $region4: #{tpu_custom_call.1} parent=0 // loop_header_branch
    %12 = sbr.rel (%p10) target = $region8
  $region5: #{tpu_custom_call.1} parent=0 // loop_body
    %s14 = ssub.s32 %s9, 1
    %s15 = ssub.s32 %s9, 2
    %s22 = sadd.s32 1, %s17
    %p23 = scmp.ge.s32.totalorder %s22, 1
    %s24 = scalar_select %p23, 0, %s22
    %s25 = sadd.s32 1, %s16
    %s26 = scalar_select %p23, %s25, %s16
    %p27 = scmp.ge.s32.totalorder %s26, 2
    %s28 = scalar_select %p27, 0, %s26
    %s29 = ssub.s32 %s16, %s28
    %s30 = ssub.s32 %s17, %s24
    %s31 = sor.u32 %s29, %s30
    %p32 = scmp.eq.s32.totalorder %s31, 0
    %s34 = sadd.s32 %s33, 1
    %s35 = scalar_select %p32, %s33, %s34
    %p38 = pneg %p32
    %p39 = scmp.eq.s32.totalorder %s9, 1
    %p40 = por %p38, %p39
    %p41 = scmp.ne.s32.totalorder %s33, %s36
    %p42 = scmp.eq.s32.totalorder %s9, 0
    %p43 = por %p41, %p42
    %p44 = scmp.ne.s32.totalorder %s33, %s36
    %p45 = scmp.eq.s32.totalorder %s14, 1
    %p46 = por %p44, %p45
    %p47 = scmp.ne.s32.totalorder %s36, %s37
    %p48 = scmp.eq.s32.totalorder %s14, 0
    %p49 = por %p47, %p48
    %p50 = scmp.ne.s32.totalorder %s36, %s37
    %p51 = scmp.eq.s32.totalorder %s15, 1
    %p52 = por %p50, %p51
    %p54 = scmp.ne.s32.totalorder %s37, %s53
    %p55 = scmp.eq.s32.totalorder %s15, 0
    %p56 = por %p54, %p55
    %s58 = sadd.s32 %s57, 1
    %p61 = scmp.eq.s32.totalorder %s9, 1
    %p62 = scmp.ne.s32.totalorder %s57, %s59
    %p63 = scmp.eq.s32.totalorder %s9, 0
    %p64 = por %p62, %p63
    %p65 = scmp.ne.s32.totalorder %s57, %s59
    %p66 = scmp.eq.s32.totalorder %s14, 1
    %p67 = por %p65, %p66
    %p68 = scmp.ne.s32.totalorder %s59, %s60
    %p69 = scmp.eq.s32.totalorder %s14, 0
    %p70 = por %p68, %p69
    %p71 = scmp.ne.s32.totalorder %s59, %s60
    %p72 = scmp.eq.s32.totalorder %s15, 1
    %p73 = por %p71, %p72
    %p75 = scmp.ne.s32.totalorder %s60, %s74
    %p76 = scmp.eq.s32.totalorder %s15, 0
    %p77 = por %p75, %p76
    %s79 = sadd.s32 %s78, 1
    %p82 = scmp.eq.s32.totalorder %s9, 1
    %p83 = scmp.ne.s32.totalorder %s78, %s80
    %p84 = scmp.eq.s32.totalorder %s9, 0
    %p85 = por %p83, %p84
    %p86 = scmp.ne.s32.totalorder %s78, %s80
    %p87 = scmp.eq.s32.totalorder %s14, 1
    %p88 = por %p86, %p87
    %p89 = scmp.ne.s32.totalorder %s80, %s81
    %p90 = scmp.eq.s32.totalorder %s14, 0
    %p91 = por %p89, %p90
    %p92 = scmp.ne.s32.totalorder %s80, %s81
    %p93 = scmp.eq.s32.totalorder %s15, 1
    %p94 = por %p92, %p93
    %p96 = scmp.ne.s32.totalorder %s81, %s95
    %p97 = scmp.eq.s32.totalorder %s15, 0
    %p98 = por %p96, %p97
    %s99 = ssub.s32 %s16, %s28
    %s100 = ssub.s32 %s17, %s24
    %s101 = sor.u32 %s99, %s100
    %p102 = scmp.eq.s32.totalorder %s101, 0
    %s104 = sadd.s32 %s103, 1
    %s105 = scalar_select %p102, %s103, %s104
    %p108 = pneg %p102
    %p109 = scmp.eq.s32.totalorder %s9, 1
    %p110 = por %p108, %p109
    %p111 = scmp.ne.s32.totalorder %s103, %s106
    %p112 = scmp.eq.s32.totalorder %s9, 0
    %p113 = por %p111, %p112
    %p114 = scmp.ne.s32.totalorder %s103, %s106
    %p115 = scmp.eq.s32.totalorder %s14, 1
    %p116 = por %p114, %p115
    %p117 = scmp.ne.s32.totalorder %s106, %s107
    %p118 = scmp.eq.s32.totalorder %s14, 0
    %p119 = por %p117, %p118
    %p120 = scmp.ne.s32.totalorder %s106, %s107
    %p121 = scmp.eq.s32.totalorder %s15, 1
    %p122 = por %p120, %p121
    %p124 = scmp.ne.s32.totalorder %s107, %s123
    %p125 = scmp.eq.s32.totalorder %s15, 0
    %p126 = por %p124, %p125
    %p127 = scmp.le.s32.totalorder 1, %s9
    %p128 = scmp.lt.s32.totalorder %s9, 3
    %p129 = pnand %p127, %p128
    %p130 = pneg %p129
    // Predicated region
    $region9: #{tpu_custom_call.1} parent=5 // pred_check
      _
    $region10: #{tpu_custom_call.1} parent=5 // pred_check_branch
      %132 = sbr.rel (%p129) target = $region12
    $region11: #{tpu_custom_call.1} parent=5 // pred_region
      %s133 = ssub.s32 %s9, 1
      // Predicated region
      $region13: #{tpu_custom_call.1} parent=11 // pred_check
        %p134 = pneg %p70
      $region14: #{tpu_custom_call.1} parent=11 // pred_check_branch
        %136 = sbr.rel (%p134) target = $region16
      $region15: #{tpu_custom_call.1} parent=11 // pred_region
        _
      $region16: #{tpu_custom_call.1} parent=11 // pred_fallthru
        _
      // Predicated region
      $region17: #{tpu_custom_call.1} parent=11 // pred_check
        %p137 = pneg %p91
      $region18: #{tpu_custom_call.1} parent=11 // pred_check_branch
        %139 = sbr.rel (%p137) target = $region20
      $region19: #{tpu_custom_call.1} parent=11 // pred_region
        _
      $region20: #{tpu_custom_call.1} parent=11 // pred_fallthru
        _
    $region12: #{tpu_custom_call.1} parent=5 // pred_fallthru
      _
    %p140 = scmp.lt.s32.totalorder %s9, 2
    // Predicated region
    $region21: #{tpu_custom_call.1} parent=5 // pred_check
      %p141 = pneg %p140
    $region22: #{tpu_custom_call.1} parent=5 // pred_check_branch
      %143 = sbr.rel (%p141) target = $region24
    $region23: #{tpu_custom_call.1} parent=5 // pred_region
      // Predicated region
      $region25: #{tpu_custom_call.1} parent=23 // pred_check
        %p144 = pneg %p43
      $region26: #{tpu_custom_call.1} parent=23 // pred_check_branch
        %146 = sbr.rel (%p144) target = $region28
      $region27: #{tpu_custom_call.1} parent=23 // pred_region
        %p147 = scmp.lt.s32.totalorder %s16, 1
        %s148 = scalar_select %p147, %s16, 1
        %p149 = scmp.lt.s32.totalorder %s17, 0
        %s150 = scalar_select %p149, %s17, 0
        %s151 = smul.addr %s148, 4
        %s152 = sadd.s32 %s150, %s151
        %s153 = smul.addr %s152, 8
        %s154 = scalar_lea.vmem %s0, %s153
      $region28: #{tpu_custom_call.1} parent=23 // pred_fallthru
        _
    $region24: #{tpu_custom_call.1} parent=5 // pred_fallthru
      _
    %p155 = scmp.le.s32.totalorder 1, %s9
    %p156 = scmp.lt.s32.totalorder %s9, 3
    %p157 = pnand %p155, %p156
    %p158 = pneg %p157
    // Predicated region
    $region29: #{tpu_custom_call.1} parent=5 // pred_check
      _
    $region30: #{tpu_custom_call.1} parent=5 // pred_check_branch
      %160 = sbr.rel (%p157) target = $region32
    $region31: #{tpu_custom_call.1} parent=5 // pred_region
      %s161 = ssub.s32 %s9, 1
      %p162 = scmp.lt.s32.totalorder %s18, 1
      %s163 = scalar_select %p162, %s18, 1
      %p164 = scmp.lt.s32.totalorder %s19, 0
      %s165 = scalar_select %p164, %s19, 0
      %s166 = smul.addr %s163, 4
      %s167 = sadd.s32 %s165, %s166
      %s168 = smul.addr %s167, 8
      %s169 = scalar_lea.vmem %s0, %s168
      %p170 = pneg %p49
      %p171 = pneg %p46
      %p172 = pneg %p70
      %p173 = pneg %p67
      %p174 = pneg %p91
      %p175 = pneg %p88
      %p176 = pneg %p119
      %p177 = pneg %p116
      %p178 = scmp.lt.s32.totalorder %s18, 1
      %s179 = scalar_select %p178, %s18, 1
      %p180 = scmp.lt.s32.totalorder %s19, 0
      %s181 = scalar_select %p180, %s19, 0
      %s182 = smul.addr %s179, 4
      %s183 = sadd.s32 %s181, %s182
      %s184 = smul.addr %s183, 8
      %s185 = scalar_lea.vmem %s3, %s184
      %p186 = scmp.lt.s32.totalorder %s18, 1
      %s187 = scalar_select %p186, %s18, 1
      %p188 = scmp.lt.s32.totalorder %s19, 0
      %s189 = scalar_select %p188, %s19, 0
      %s190 = smul.addr %s187, 4
      %s191 = sadd.s32 %s189, %s190
      %s192 = smul.addr %s191, 8
      %s193 = scalar_lea.vmem %s0, %s192
      %p194 = scmp.lt.s32.totalorder %s18, 1
      %s195 = scalar_select %p194, %s18, 1
      %p196 = scmp.lt.s32.totalorder %s19, 0
      %s197 = scalar_select %p196, %s19, 0
      %s198 = smul.addr %s195, 4
      %s199 = sadd.s32 %s197, %s198
      %s200 = smul.addr %s199, 8
      %s201 = scalar_lea.vmem %s3, %s200
      %v202 = vld [vmem:[%s193] sm:$0xff]
      %v203 = vld [vmem:[%s193 + $0x8] sm:$0xff]
      %v204 = vld [vmem:[%s193 + $0x10] sm:$0xff]
      %v205 = vld [vmem:[%s193 + $0x18] sm:$0xff]
      %v206 = vld [vmem:[%s1] sm:$0xff]
      %v207 = vld [vmem:[%s1 + $0x8] sm:$0xff]
      %v208 = vld [vmem:[%s1 + $0x10] sm:$0xff]
      %v209 = vld [vmem:[%s1 + $0x18] sm:$0xff]
      %v210 = vld [vmem:[%s1 + $0x20] sm:$0xff]
      %v211 = vld [vmem:[%s1 + $0x28] sm:$0xff]
      %v212 = vld [vmem:[%s1 + $0x30] sm:$0xff]
      %v213 = vld [vmem:[%s1 + $0x38] sm:$0xff]
      %v214 = vld [vmem:[%s2] sm:$0xff]
      %v215 = vld [vmem:[%s2 + $0x8] sm:$0xff]
      %v216 = vld [vmem:[%s2 + $0x10] sm:$0xff]
      %v217 = vld [vmem:[%s2 + $0x18] sm:$0xff]
      %v218 = vld [vmem:[%s2 + $0x20] sm:$0xff]
      %v219 = vld [vmem:[%s2 + $0x28] sm:$0xff]
      %v220 = vld [vmem:[%s2 + $0x30] sm:$0xff]
      %v221 = vld [vmem:[%s2 + $0x38] sm:$0xff]
      %223 = vset.pattern.permute.xlu0 0
      %224 = vperm.xlu0 %223, %v214
      %v225 = vpop.permute.xlu0 %224
      %228 = vset.pattern.permute.xlu0 0
      %229 = vperm.xlu0 %228, %v215
      %v230 = vpop.permute.xlu0 %229
      %233 = vset.pattern.permute.xlu0 0
      %234 = vperm.xlu0 %233, %v216
      %v235 = vpop.permute.xlu0 %234
      %238 = vset.pattern.permute.xlu0 0
      %239 = vperm.xlu0 %238, %v217
      %v240 = vpop.permute.xlu0 %239
      %243 = vset.pattern.permute.xlu0 0
      %244 = vperm.xlu0 %243, %v218
      %v245 = vpop.permute.xlu0 %244
      %248 = vset.pattern.permute.xlu0 0
      %249 = vperm.xlu0 %248, %v219
      %v250 = vpop.permute.xlu0 %249
      %253 = vset.pattern.permute.xlu0 0
      %254 = vperm.xlu0 %253, %v220
      %v255 = vpop.permute.xlu0 %254
      %258 = vset.pattern.permute.xlu0 0
      %259 = vperm.xlu0 %258, %v221
      %v260 = vpop.permute.xlu0 %259
      %vm262 = vcmask 261120
      %v264 = vsel %vm262, %v206, 0
      %v267 = vsel %vm262, %v207, 0
      %v270 = vsel %vm262, %v208, 0
      %v273 = vsel %vm262, %v209, 0
      %v276 = vsel %vm262, %v210, 0
      %v279 = vsel %vm262, %v211, 0
      %v282 = vsel %vm262, %v212, 0
      %v285 = vsel %vm262, %v213, 0
      %287 = vmatpush.msra.mxu0 0.0
      %288 = vmatpush.msra.mxu0 0.0
      %289 = vmatpush.msra.mxu0 0.0
      %290 = vmatpush.msra.mxu0 0.0
      %291 = vmatpush.msra.mxu0 0.0
      %292 = vmatpush.msra.mxu0 0.0
      %293 = vmatpush.msra.mxu0 0.0
      %294 = vmatpush.msra.mxu0 0.0
      %295 = vmatpush.msra.mxu0 0.0
      %296 = vmatpush.msra.mxu0 0.0
      %297 = vmatpush.msra.mxu0 0.0
      %298 = vmatpush.msra.mxu0 0.0
      %299 = vmatpush.msra.mxu0 %v205
      %300 = vmatpush.msra.mxu0 %v204
      %301 = vmatpush.msra.mxu0 %v203
      %302 = vmatpush.msra.mxu0 %v202
      %303 = vmatmul.f32.gmra.mxu0 %v264
      %v304 = vpop.f32.mrf.mxu0
      %v305 = vadd.f32 %v225, %v304
      %306 = vmatmul.f32.gmra.mxu0 %v267
      %v307 = vpop.f32.mrf.mxu0
      %v308 = vadd.f32 %v230, %v307
      %309 = vmatmul.f32.gmra.mxu0 %v270
      %v310 = vpop.f32.mrf.mxu0
      %v311 = vadd.f32 %v235, %v310
      %312 = vmatmul.f32.gmra.mxu0 %v273
      %v313 = vpop.f32.mrf.mxu0
      %v314 = vadd.f32 %v240, %v313
      %315 = vmatmul.f32.gmra.mxu0 %v276
      %v316 = vpop.f32.mrf.mxu0
      %v317 = vadd.f32 %v245, %v316
      %318 = vmatmul.f32.gmra.mxu0 %v279
      %v319 = vpop.f32.mrf.mxu0
      %v320 = vadd.f32 %v250, %v319
      %321 = vmatmul.f32.gmra.mxu0 %v282
      %v322 = vpop.f32.mrf.mxu0
      %v323 = vadd.f32 %v255, %v322
      %324 = vmatmul.f32.gmra.mxu0 %v285
      %v325 = vpop.f32.mrf.mxu0
      %v326 = vadd.f32 %v260, %v325
      %327 = vdwg.mxu0
      %v328 = vxor.u32 %v305, 2147483648
      %v329 = vxor.u32 %v308, 2147483648
      %v330 = vxor.u32 %v311, 2147483648
      %v331 = vxor.u32 %v314, 2147483648
      %v332 = vmul.f32 %v328, 1.442695
      %v333 = vpow.pop %v332
      %v334 = vmul.f32 %v329, 1.442695
      %v335 = vpow.pop %v334
      %v336 = vmul.f32 %v330, 1.442695
      %v337 = vpow.pop %v336
      %v338 = vmul.f32 %v331, 1.442695
      %v339 = vpow.pop %v338
      %v340 = vadd.f32 %v333, 1.0
      %v341 = vadd.f32 %v335, 1.0
      %v342 = vadd.f32 %v337, 1.0
      %v343 = vadd.f32 %v339, 1.0
      %v344 = vrcp.pop %v340
      %v345 = vmul.f32 %v340, %v344
      %v346 = vsub.f32 1.0, %v345
      %v347 = vmul.f32 %v344, %v346
      %v348 = vadd.f32 %v344, %v347
      %vm349 = vweird.f32 %v340
      %vm350 = vweird.f32 %v344
      %vm351 = vmor %vm349, %vm350
      %v352 = vsel %vm351, %v344, %v348
      %v353 = vand.u32 2147483647, %v340
      %vm354 = vcmp.eq.f32.partialorder %v353, 8.507059e+37
      %v355 = vand.u32 %v340, 2147483648
      %v356 = vor.u32 1.1754944e-38, %v355
      %v357 = vsel %vm354, %v356, %v352
      %v358 = vmul.f32 1.0, %v357
      %v359 = vrcp.pop %v341
      %v360 = vmul.f32 %v341, %v359
      %v361 = vsub.f32 1.0, %v360
      %v362 = vmul.f32 %v359, %v361
      %v363 = vadd.f32 %v359, %v362
      %vm364 = vweird.f32 %v341
      %vm365 = vweird.f32 %v359
      %vm366 = vmor %vm364, %vm365
      %v367 = vsel %vm366, %v359, %v363
      %v368 = vand.u32 2147483647, %v341
      %vm369 = vcmp.eq.f32.partialorder %v368, 8.507059e+37
      %v370 = vand.u32 %v341, 2147483648
      %v371 = vor.u32 1.1754944e-38, %v370
      %v372 = vsel %vm369, %v371, %v367
      %v373 = vmul.f32 1.0, %v372
      %v374 = vrcp.pop %v342
      %v375 = vmul.f32 %v342, %v374
      %v376 = vsub.f32 1.0, %v375
      %v377 = vmul.f32 %v374, %v376
      %v378 = vadd.f32 %v374, %v377
      %vm379 = vweird.f32 %v342
      %vm380 = vweird.f32 %v374
      %vm381 = vmor %vm379, %vm380
      %v382 = vsel %vm381, %v374, %v378
      %v383 = vand.u32 2147483647, %v342
      %vm384 = vcmp.eq.f32.partialorder %v383, 8.507059e+37
      %v385 = vand.u32 %v342, 2147483648
      %v386 = vor.u32 1.1754944e-38, %v385
      %v387 = vsel %vm384, %v386, %v382
      %v388 = vmul.f32 1.0, %v387
      %v389 = vrcp.pop %v343
      %v390 = vmul.f32 %v343, %v389
      %v391 = vsub.f32 1.0, %v390
      %v392 = vmul.f32 %v389, %v391
      %v393 = vadd.f32 %v389, %v392
      %vm394 = vweird.f32 %v343
      %vm395 = vweird.f32 %v389
      %vm396 = vmor %vm394, %vm395
      %v397 = vsel %vm396, %v389, %v393
      %v398 = vand.u32 2147483647, %v343
      %vm399 = vcmp.eq.f32.partialorder %v398, 8.507059e+37
      %v400 = vand.u32 %v343, 2147483648
      %v401 = vor.u32 1.1754944e-38, %v400
      %v402 = vsel %vm399, %v401, %v397
      %v403 = vmul.f32 1.0, %v402
      %v404 = vsub.f32 %v317, %v202
      %v405 = vsub.f32 %v320, %v203
      %v406 = vsub.f32 %v323, %v204
      %v407 = vsub.f32 %v326, %v205
      %v408 = vmul.f32 %v358, %v404
      %v409 = vmul.f32 %v373, %v405
      %v410 = vmul.f32 %v388, %v406
      %v411 = vmul.f32 %v403, %v407
      %v412 = vadd.f32 %v202, %v408
      %v413 = vadd.f32 %v203, %v409
      %v414 = vadd.f32 %v204, %v410
      %v415 = vadd.f32 %v205, %v411
      %s416 = scalar_lea.vmem %s1, 64
      %v417 = vld [vmem:[%s416] sm:$0xff]
      %v418 = vld [vmem:[%s416 + $0x8] sm:$0xff]
      %v419 = vld [vmem:[%s416 + $0x10] sm:$0xff]
      %v420 = vld [vmem:[%s416 + $0x18] sm:$0xff]
      %v421 = vld [vmem:[%s416 + $0x20] sm:$0xff]
      %v422 = vld [vmem:[%s416 + $0x28] sm:$0xff]
      %v423 = vld [vmem:[%s416 + $0x30] sm:$0xff]
      %v424 = vld [vmem:[%s416 + $0x38] sm:$0xff]
      %s425 = scalar_lea.vmem %s2, 64
      %v426 = vld [vmem:[%s425] sm:$0xff]
      %v427 = vld [vmem:[%s425 + $0x8] sm:$0xff]
      %v428 = vld [vmem:[%s425 + $0x10] sm:$0xff]
      %v429 = vld [vmem:[%s425 + $0x18] sm:$0xff]
      %v430 = vld [vmem:[%s425 + $0x20] sm:$0xff]
      %v431 = vld [vmem:[%s425 + $0x28] sm:$0xff]
      %v432 = vld [vmem:[%s425 + $0x30] sm:$0xff]
      %v433 = vld [vmem:[%s425 + $0x38] sm:$0xff]
      %435 = vset.pattern.permute.xlu0 0
      %436 = vperm.xlu0 %435, %v426
      %v437 = vpop.permute.xlu0 %436
      %440 = vset.pattern.permute.xlu0 0
      %441 = vperm.xlu0 %440, %v427
      %v442 = vpop.permute.xlu0 %441
      %445 = vset.pattern.permute.xlu0 0
      %446 = vperm.xlu0 %445, %v428
      %v447 = vpop.permute.xlu0 %446
      %450 = vset.pattern.permute.xlu0 0
      %451 = vperm.xlu0 %450, %v429
      %v452 = vpop.permute.xlu0 %451
      %455 = vset.pattern.permute.xlu0 0
      %456 = vperm.xlu0 %455, %v430
      %v457 = vpop.permute.xlu0 %456
      %460 = vset.pattern.permute.xlu0 0
      %461 = vperm.xlu0 %460, %v431
      %v462 = vpop.permute.xlu0 %461
      %465 = vset.pattern.permute.xlu0 0
      %466 = vperm.xlu0 %465, %v432
      %v467 = vpop.permute.xlu0 %466
      %470 = vset.pattern.permute.xlu0 0
      %471 = vperm.xlu0 %470, %v433
      %v472 = vpop.permute.xlu0 %471
      %v475 = vsel %vm262, %v417, 0
      %v478 = vsel %vm262, %v418, 0
      %v481 = vsel %vm262, %v419, 0
      %v484 = vsel %vm262, %v420, 0
      %v487 = vsel %vm262, %v421, 0
      %v490 = vsel %vm262, %v422, 0
      %v493 = vsel %vm262, %v423, 0
      %v496 = vsel %vm262, %v424, 0
      %498 = vmatpush.msra.mxu0 0.0
      %499 = vmatpush.msra.mxu0 0.0
      %500 = vmatpush.msra.mxu0 0.0
      %501 = vmatpush.msra.mxu0 0.0
      %502 = vmatpush.msra.mxu0 0.0
      %503 = vmatpush.msra.mxu0 0.0
      %504 = vmatpush.msra.mxu0 0.0
      %505 = vmatpush.msra.mxu0 0.0
      %506 = vmatpush.msra.mxu0 0.0
      %507 = vmatpush.msra.mxu0 0.0
      %508 = vmatpush.msra.mxu0 0.0
      %509 = vmatpush.msra.mxu0 0.0
      %510 = vmatpush.msra.mxu0 %v415
      %511 = vmatpush.msra.mxu0 %v414
      %512 = vmatpush.msra.mxu0 %v413
      %513 = vmatpush.msra.mxu0 %v412
      %514 = vmatmul.f32.gmra.mxu0 %v475
      %v515 = vpop.f32.mrf.mxu0
      %v516 = vadd.f32 %v437, %v515
      %517 = vmatmul.f32.gmra.mxu0 %v478
      %v518 = vpop.f32.mrf.mxu0
      %v519 = vadd.f32 %v442, %v518
      %520 = vmatmul.f32.gmra.mxu0 %v481
      %v521 = vpop.f32.mrf.mxu0
      %v522 = vadd.f32 %v447, %v521
      %523 = vmatmul.f32.gmra.mxu0 %v484
      %v524 = vpop.f32.mrf.mxu0
      %v525 = vadd.f32 %v452, %v524
      %526 = vmatmul.f32.gmra.mxu0 %v487
      %v527 = vpop.f32.mrf.mxu0
      %v528 = vadd.f32 %v457, %v527
      %529 = vmatmul.f32.gmra.mxu0 %v490
      %v530 = vpop.f32.mrf.mxu0
      %v531 = vadd.f32 %v462, %v530
      %532 = vmatmul.f32.gmra.mxu0 %v493
      %v533 = vpop.f32.mrf.mxu0
      %v534 = vadd.f32 %v467, %v533
      %535 = vmatmul.f32.gmra.mxu0 %v496
      %v536 = vpop.f32.mrf.mxu0
      %v537 = vadd.f32 %v472, %v536
      %538 = vdwg.mxu0
      %v539 = vxor.u32 %v516, 2147483648
      %v540 = vxor.u32 %v519, 2147483648
      %v541 = vxor.u32 %v522, 2147483648
      %v542 = vxor.u32 %v525, 2147483648
      %v543 = vmul.f32 %v539, 1.442695
      %v544 = vpow.pop %v543
      %v545 = vmul.f32 %v540, 1.442695
      %v546 = vpow.pop %v545
      %v547 = vmul.f32 %v541, 1.442695
      %v548 = vpow.pop %v547
      %v549 = vmul.f32 %v542, 1.442695
      %v550 = vpow.pop %v549
      %v551 = vadd.f32 %v544, 1.0
      %v552 = vadd.f32 %v546, 1.0
      %v553 = vadd.f32 %v548, 1.0
      %v554 = vadd.f32 %v550, 1.0
      %v555 = vrcp.pop %v551
      %v556 = vmul.f32 %v551, %v555
      %v557 = vsub.f32 1.0, %v556
      %v558 = vmul.f32 %v555, %v557
      %v559 = vadd.f32 %v555, %v558
      %vm560 = vweird.f32 %v551
      %vm561 = vweird.f32 %v555
      %vm562 = vmor %vm560, %vm561
      %v563 = vsel %vm562, %v555, %v559
      %v564 = vand.u32 2147483647, %v551
      %vm565 = vcmp.eq.f32.partialorder %v564, 8.507059e+37
      %v566 = vand.u32 %v551, 2147483648
      %v567 = vor.u32 1.1754944e-38, %v566
      %v568 = vsel %vm565, %v567, %v563
      %v569 = vmul.f32 1.0, %v568
      %v570 = vrcp.pop %v552
      %v571 = vmul.f32 %v552, %v570
      %v572 = vsub.f32 1.0, %v571
      %v573 = vmul.f32 %v570, %v572
      %v574 = vadd.f32 %v570, %v573
      %vm575 = vweird.f32 %v552
      %vm576 = vweird.f32 %v570
      %vm577 = vmor %vm575, %vm576
      %v578 = vsel %vm577, %v570, %v574
      %v579 = vand.u32 2147483647, %v552
      %vm580 = vcmp.eq.f32.partialorder %v579, 8.507059e+37
      %v581 = vand.u32 %v552, 2147483648
      %v582 = vor.u32 1.1754944e-38, %v581
      %v583 = vsel %vm580, %v582, %v578
      %v584 = vmul.f32 1.0, %v583
      %v585 = vrcp.pop %v553
      %v586 = vmul.f32 %v553, %v585
      %v587 = vsub.f32 1.0, %v586
      %v588 = vmul.f32 %v585, %v587
      %v589 = vadd.f32 %v585, %v588
      %vm590 = vweird.f32 %v553
      %vm591 = vweird.f32 %v585
      %vm592 = vmor %vm590, %vm591
      %v593 = vsel %vm592, %v585, %v589
      %v594 = vand.u32 2147483647, %v553
      %vm595 = vcmp.eq.f32.partialorder %v594, 8.507059e+37
      %v596 = vand.u32 %v553, 2147483648
      %v597 = vor.u32 1.1754944e-38, %v596
      %v598 = vsel %vm595, %v597, %v593
      %v599 = vmul.f32 1.0, %v598
      %v600 = vrcp.pop %v554
      %v601 = vmul.f32 %v554, %v600
      %v602 = vsub.f32 1.0, %v601
      %v603 = vmul.f32 %v600, %v602
      %v604 = vadd.f32 %v600, %v603
      %vm605 = vweird.f32 %v554
      %vm606 = vweird.f32 %v600
      %vm607 = vmor %vm605, %vm606
      %v608 = vsel %vm607, %v600, %v604
      %v609 = vand.u32 2147483647, %v554
      %vm610 = vcmp.eq.f32.partialorder %v609, 8.507059e+37
      %v611 = vand.u32 %v554, 2147483648
      %v612 = vor.u32 1.1754944e-38, %v611
      %v613 = vsel %vm610, %v612, %v608
      %v614 = vmul.f32 1.0, %v613
      %v615 = vsub.f32 %v528, %v412
      %v616 = vsub.f32 %v531, %v413
      %v617 = vsub.f32 %v534, %v414
      %v618 = vsub.f32 %v537, %v415
      %v619 = vmul.f32 %v569, %v615
      %v620 = vmul.f32 %v584, %v616
      %v621 = vmul.f32 %v599, %v617
      %v622 = vmul.f32 %v614, %v618
      %v623 = vadd.f32 %v412, %v619
      %v624 = vadd.f32 %v413, %v620
      %v625 = vadd.f32 %v414, %v621
      %v626 = vadd.f32 %v415, %v622
      %vm627 = vcmask 130048
      %628 = vst.msk [vmem:[%s201] sm:$0xff] %vm627, %v623
      %629 = vst.msk [vmem:[%s201 + $0x8] sm:$0xff] %vm627, %v624
      %630 = vst.msk [vmem:[%s201 + $0x10] sm:$0xff] %vm627, %v625
      %631 = vst.msk [vmem:[%s201 + $0x18] sm:$0xff] %vm627, %v626
      %p632 = scmp.lt.s32.totalorder %s18, 1
      %s633 = scalar_select %p632, %s18, 1
      %p634 = scmp.lt.s32.totalorder %s19, 0
      %s635 = scalar_select %p634, %s19, 0
      %s636 = smul.addr %s633, 4
      %s637 = sadd.s32 %s635, %s636
      %s638 = smul.addr %s637, 8
      %s639 = scalar_lea.vmem %s3, %s638
      // Predicated region
      $region33: #{tpu_custom_call.1} parent=31 // pred_check
        %p640 = pneg %p116
      $region34: #{tpu_custom_call.1} parent=31 // pred_check_branch
        %642 = sbr.rel (%p640) target = $region36
      $region35: #{tpu_custom_call.1} parent=31 // pred_region
        _
      $region36: #{tpu_custom_call.1} parent=31 // pred_fallthru
        _
    $region32: #{tpu_custom_call.1} parent=5 // pred_fallthru
      _
    %p643 = scmp.le.s32.totalorder 2, %s9
    // Predicated region
    $region37: #{tpu_custom_call.1} parent=5 // pred_check
      %p644 = pneg %p643
    $region38: #{tpu_custom_call.1} parent=5 // pred_check_branch
      %646 = sbr.rel (%p644) target = $region40
    $region39: #{tpu_custom_call.1} parent=5 // pred_region
      %s647 = ssub.s32 %s9, 2
      // Predicated region
      $region41: #{tpu_custom_call.1} parent=39 // pred_check
        %p648 = pneg %p122
      $region42: #{tpu_custom_call.1} parent=39 // pred_check_branch
        %650 = sbr.rel (%p648) target = $region44
      $region43: #{tpu_custom_call.1} parent=39 // pred_region
        %p651 = scmp.lt.s32.totalorder %s20, 1
        %s652 = scalar_select %p651, %s20, 1
        %p653 = scmp.lt.s32.totalorder %s21, 0
        %s654 = scalar_select %p653, %s21, 0
        %s655 = smul.addr %s652, 4
        %s656 = sadd.s32 %s654, %s655
        %s657 = smul.addr %s656, 8
        %s658 = scalar_lea.vmem %s3, %s657
      $region44: #{tpu_custom_call.1} parent=39 // pred_fallthru
        _
    $region40: #{tpu_custom_call.1} parent=5 // pred_fallthru
      _
  $region6: #{tpu_custom_call.1} parent=0 // loop_footer
    %s13 = sadd.s32 1, %s9
  $region7: #{tpu_custom_call.1} parent=0 // loop_footer_branch
    %8 = sbr.rel target = $region3
  $region8: #{tpu_custom_call.1} parent=0 // loop_exit
    _

</llo_original>
